<compile_context>
chip_gen: v7x
topology: tpu7x:2x2x1
jax: 0.10.0
libtpu: 0.0.40
codegen_flags: <defaults>
</compile_context>

<pallas_src>
import math
import functools

import jax
import jax.numpy as jnp
from jax import lax
from jax.experimental import pallas as pl
from jax.experimental.pallas import tpu as pltpu


@functools.lru_cache(maxsize=None)
def _vmem_limit():
    # ~48 MiB on v7x (64 MiB physical VMEM), ~96 MiB on v5e/v6e (128 MiB).
    cap = 64 * 1024 * 1024
    try:
        info = pltpu.get_tpu_info()
        cap = int(getattr(info, "vmem_capacity_bytes", cap))
    except Exception:
        pass
    return int(min(cap * 3 // 4, 112 * 1024 * 1024))


def _ceil_div(a, b):
    return -(-a // b)


def _choose_qtile(S):
    # 128-row query tiles for real sizes; for small S split into ~2
    # sublane-aligned tiles so there are >=2 units of pipelined work.
    if S >= 256:
        return 128
    return max(8, _ceil_div(_ceil_div(S, 2), 8) * 8)


# --------------------------------------------------------------------------
# Kernel 1: 1x1 conv (channel matmul, bf16 operands) + GroupNorm, one batch
# element per grid step.  Per-channel moments are computed with a bf16
# ones-row MXU matmul (f32 accumulation, scale by 1/S afterwards); variance
# is a centered two-pass.  The block-diagonal `avg` matmul maps per-channel
# stats to per-group stats broadcast back over channels.
# TODO(synk): for real DETR Cin (2048) on v7x this kernel should also tile
# over S with partial-moment accumulation to add parallel work / bound VMEM.
# --------------------------------------------------------------------------
def proj_gn_kernel(x_ref, w_ref, b_ref, avg_ref, gamma_ref, beta_ref, o_ref):
    f32, bf16 = jnp.float32, jnp.bfloat16
    x = x_ref[0]                                                      # (S, Cin_p) bf16
    y = jnp.dot(x, w_ref[...], preferred_element_type=f32) + b_ref[...]   # (S, C) f32
    S = y.shape[0]
    inv_s = 1.0 / S
    ones_row = jnp.ones((1, S), dtype=bf16)                           # exact 1.0 in bf16
    # per-channel mean via single-pass bf16 MXU matmul, f32 accumulation
    m = jnp.dot(ones_row, y.astype(bf16), preferred_element_type=f32) * inv_s   # (1, C)
    gm = jnp.dot(m, avg_ref[...], preferred_element_type=f32)         # per-group mean
    yc = y - gm                                                       # centered (f32)
    yc_bf = yc.astype(bf16)
    m2 = jnp.dot(ones_row, yc_bf * yc_bf, preferred_element_type=f32) * inv_s   # (1, C)
    gvar = jnp.dot(m2, avg_ref[...], preferred_element_type=f32)      # per-group var
    o_ref[0] = yc * lax.rsqrt(gvar + 1e-5) * gamma_ref[...] + beta_ref[...]


def input_proj_groupnorm(x_bsc, w, b, gamma, beta, num_groups):
    B, S, Cin = x_bsc.shape
    C = w.shape[1]
    cg = C // num_groups
    # pad tiny Cin up to a bf16-sublane multiple (zero rows don't change the matmul)
    cin_pad = (-Cin) % 16
    if cin_pad:
        x_bsc = jnp.pad(x_bsc, ((0, 0), (0, 0), (0, cin_pad)))
        w = jnp.pad(w, ((0, cin_pad), (0, 0)))
    Cin_p = Cin + cin_pad
    x_bsc = x_bsc.astype(jnp.bfloat16)
    w = w.astype(jnp.bfloat16)
    # block-diagonal matrix mapping per-channel stats to per-group averages
    avg = jnp.kron(jnp.eye(num_groups, dtype=jnp.float32),
                   jnp.full((cg, cg), 1.0 / cg, dtype=jnp.float32))
    return pl.pallas_call(
        proj_gn_kernel,
        out_shape=jax.ShapeDtypeStruct((B, S, C), jnp.float32),
        grid=(B,),
        in_specs=[
            pl.BlockSpec((1, S, Cin_p), lambda bb: (bb, 0, 0)),
            pl.BlockSpec((Cin_p, C), lambda bb: (0, 0)),
            pl.BlockSpec((1, C), lambda bb: (0, 0)),
            pl.BlockSpec((C, C), lambda bb: (0, 0)),
            pl.BlockSpec((1, C), lambda bb: (0, 0)),
            pl.BlockSpec((1, C), lambda bb: (0, 0)),
        ],
        out_specs=pl.BlockSpec((1, S, C), lambda bb: (bb, 0, 0)),
        compiler_params=pltpu.CompilerParams(
            dimension_semantics=("parallel",),
            vmem_limit_bytes=_vmem_limit()),
    )(x_bsc, w, b, avg, gamma, beta)


# --------------------------------------------------------------------------
# Kernel 2: one post-norm transformer encoder layer.
# Grid = (batch, query-tile); the query-tile axis is "arbitrary" so K/V can be
# projected once per batch element (first query tile) into persistent bf16
# VMEM scratch and reused by all remaining query tiles.  Per tile: Q
# projection, per-head scores, exact softmax (normalized after the PV matmul),
# single output projection, residual + LN1, FFN(relu), residual + LN2.
# --------------------------------------------------------------------------
def encoder_layer_kernel(nhead, tq, s_valid,
                         src_ref, pos_ref,
                         wq_ref, bq_ref, wk_ref, bk_ref, wv_ref, bv_ref,
                         wo_ref, bo_ref, ln1g_ref, ln1b_ref,
                         w1_ref, b1_ref, w2_ref, b2_ref, ln2g_ref, ln2b_ref,
                         o_ref,
                         k_scr, v_scr, attn_scr):
    f32, bf16 = jnp.float32, jnp.bfloat16
    S, C = k_scr.shape                     # padded sequence length, model width
    D = C // nhead
    qi = pl.program_id(1)

    # ---- K/V projection: once per batch element (first query tile only) ----
    @pl.when(qi == 0)
    def _():
        src_full = src_ref[0]                                     # (S, C) f32
        kin = (src_full + pos_ref[0]).astype(bf16)
        k = jnp.dot(kin, wk_ref[...], preferred_element_type=f32) + bk_ref[...]
        v = jnp.dot(src_full.astype(bf16), wv_ref[...],
                    preferred_element_type=f32) + bv_ref[...]
        k_scr[...] = k.astype(bf16)        # single full-width bf16 cast
        v_scr[...] = v.astype(bf16)

    # ---- Q projection for this query tile ----------------------------------
    row0 = pl.multiple_of(qi * tq, tq)
    src_t = src_ref[0, pl.ds(row0, tq), :]                        # (tq, C) f32
    pos_t = pos_ref[0, pl.ds(row0, tq), :]
    qin = (src_t + pos_t).astype(bf16)
    # 1/sqrt(D) is folded into wq AND bq at parameter-build time.
    q = jnp.dot(qin, wq_ref[...], preferred_element_type=f32) + bq_ref[...]
    q = q.astype(bf16)                                            # one cast, sliced per head
    k = k_scr[...]                                                # (S, C) bf16
    v = v_scr[...]

    if s_valid < S:                                               # static padding mask
        kidx = lax.broadcasted_iota(jnp.int32, (1, S), 1)
        mask_add = jnp.where(kidx < s_valid, 0.0, -1e30).astype(f32)
    else:
        mask_add = None

    cdims = (((1,), (1,)), ((), ()))                              # q @ k^T (contract D)
    for h in range(nhead):
        lo = h * D
        sh = lax.dot_general(q[:, lo:lo + D], k[:, lo:lo + D],
                             dimension_numbers=cdims,
                             preferred_element_type=f32)          # (tq, S) f32
        if mask_add is not None:
            sh = sh + mask_add
        m = jnp.max(sh, axis=-1, keepdims=True)
        e = jnp.exp(sh - m)
        denom = jnp.sum(e, axis=-1, keepdims=True)
        oh = jnp.dot(e.astype(bf16), v[:, lo:lo + D],
                     preferred_element_type=f32)                  # (tq, D)
        # normalize AFTER the PV matmul: (tq, D) multiply instead of (tq, S)
        attn_scr[:, lo:lo + D] = oh * pl.reciprocal(denom, approx=True)

    attn_out = jnp.dot(attn_scr[...].astype(bf16), wo_ref[...],
                       preferred_element_type=f32) + bo_ref[...]  # single K=C matmul

    # residual + LayerNorm 1 (f32 statistics)
    x = src_t + attn_out
    mu = jnp.mean(x, axis=-1, keepdims=True)
    xc = x - mu
    var = jnp.mean(xc * xc, axis=-1, keepdims=True)
    x = xc * lax.rsqrt(var + 1e-5) * ln1g_ref[...] + ln1b_ref[...]

    # FFN (relu) + residual + LayerNorm 2
    hmid = jnp.dot(x.astype(bf16), w1_ref[...], preferred_element_type=f32) + b1_ref[...]
    hmid = jnp.maximum(hmid, 0.0)
    ff = jnp.dot(hmid.astype(bf16), w2_ref[...], preferred_element_type=f32) + b2_ref[...]
    y = x + ff
    mu2 = jnp.mean(y, axis=-1, keepdims=True)
    yc = y - mu2
    var2 = jnp.mean(yc * yc, axis=-1, keepdims=True)
    o_ref[0] = yc * lax.rsqrt(var2 + 1e-5) * ln2g_ref[...] + ln2b_ref[...]


def encoder_layer(src, pos, lp, nhead, tq, s_valid):
    B, S, C = src.shape          # S here is the padded length (multiple of tq)
    F = lp["w1"].shape[1]
    nq = S // tq

    def const_spec(shape):
        nd = len(shape)
        return pl.BlockSpec(shape, lambda b, q, _nd=nd: (0,) * _nd)

    kern = functools.partial(encoder_layer_kernel, nhead, tq, s_valid)
    return pl.pallas_call(
        kern,
        out_shape=jax.ShapeDtypeStruct((B, S, C), jnp.float32),
        grid=(B, nq),
        in_specs=[
            pl.BlockSpec((1, S, C), lambda b, q: (b, 0, 0)),   # src (full rows for K/V)
            pl.BlockSpec((1, S, C), lambda b, q: (0, 0, 0)),   # pos (shared across batch)
            const_spec((C, C)), const_spec((1, C)),            # wq, bq (scale folded)
            const_spec((C, C)), const_spec((1, C)),            # wk, bk
            const_spec((C, C)), const_spec((1, C)),            # wv, bv
            const_spec((C, C)), const_spec((1, C)),            # wo, bo
            const_spec((1, C)), const_spec((1, C)),            # ln1 gamma/beta
            const_spec((C, F)), const_spec((1, F)),            # w1, b1
            const_spec((F, C)), const_spec((1, C)),            # w2, b2
            const_spec((1, C)), const_spec((1, C)),            # ln2 gamma/beta
        ],
        out_specs=pl.BlockSpec((1, tq, C), lambda b, q: (b, q, 0)),
        scratch_shapes=[
            pltpu.VMEM((S, C), jnp.bfloat16),    # K (persists across query tiles)
            pltpu.VMEM((S, C), jnp.bfloat16),    # V
            pltpu.VMEM((tq, C), jnp.float32),    # per-head attention outputs
        ],
        compiler_params=pltpu.CompilerParams(
            # q axis must be sequential so the K/V scratch filled at qi==0 is
            # reused by the remaining tiles of the same batch element.
            dimension_semantics=("parallel", "arbitrary"),
            vmem_limit_bytes=_vmem_limit()),
    )(src, pos,
      lp["wq"], lp["bq"], lp["wk"], lp["bk"], lp["wv"], lp["bv"],
      lp["wo"], lp["bo"], lp["ln1_g"], lp["ln1_b"],
      lp["w1"], lp["b1"], lp["w2"], lp["b2"], lp["ln2_g"], lp["ln2_b"])


# --------------------------------------------------------------------------
# PositionEmbeddingSine (normalize=True) — pure elementwise precompute (glue).
# Returns (1, S, C): identical across batch, so one block is shared via a
# constant index_map (no per-batch DMA).
# --------------------------------------------------------------------------
def position_embedding_sine(H, W, num_pos_feats, temperature=10000.0):
    scale = 2.0 * math.pi
    eps = 1e-6
    y_embed = jnp.broadcast_to(
        jnp.arange(1, H + 1, dtype=jnp.float32)[:, None], (H, W))
    x_embed = jnp.broadcast_to(
        jnp.arange(1, W + 1, dtype=jnp.float32)[None, :], (H, W))
    y_embed = y_embed / (float(H) + eps) * scale
    x_embed = x_embed / (float(W) + eps) * scale
    dim_t = jnp.arange(num_pos_feats, dtype=jnp.float32)
    dim_t = temperature ** (2.0 * jnp.floor(dim_t / 2.0) / num_pos_feats)
    pos_x = x_embed[:, :, None] / dim_t
    pos_y = y_embed[:, :, None] / dim_t
    pos_x = jnp.stack([jnp.sin(pos_x[:, :, 0::2]),
                       jnp.cos(pos_x[:, :, 1::2])], axis=-1).reshape(H, W, num_pos_feats)
    pos_y = jnp.stack([jnp.sin(pos_y[:, :, 0::2]),
                       jnp.cos(pos_y[:, :, 1::2])], axis=-1).reshape(H, W, num_pos_feats)
    pos = jnp.concatenate([pos_y, pos_x], axis=-1)          # (H, W, 2*npf)
    return pos.reshape(1, H * W, 2 * num_pos_feats)


# --------------------------------------------------------------------------
# Parameter construction (deterministic, xavier-uniform for dim>1 weights,
# matching _reset_parameters; LN/GN affine identity, biases zero).  Matmul
# weights are stored in bf16; 1/sqrt(D) is folded into BOTH wq and bq.
# --------------------------------------------------------------------------
def xavier(key, shape, fan_in, fan_out):
    limit = math.sqrt(6.0 / (fan_in + fan_out))
    return jax.random.uniform(key, shape, jnp.float32, -limit, limit)


def make_params(key, in_channels, conv_dim, nhead, num_layers, dim_feedforward):
    C = conv_dim
    D = C // nhead
    scale = 1.0 / math.sqrt(D)
    keys = jax.random.split(key, 1 + num_layers)

    # 1x1 conv: torch weight (C, Cin, 1, 1); we store its (Cin, C) transpose.
    proj_w = xavier(keys[0], (in_channels, C), in_channels, C).astype(jnp.bfloat16)
    proj_b = jnp.zeros((1, C), jnp.float32)
    gn_gamma = jnp.ones((1, C), jnp.float32)
    gn_beta = jnp.zeros((1, C), jnp.float32)

    layers = []
    for li in range(num_layers):
        lk = jax.random.split(keys[1 + li], 6)
        wq_t = xavier(lk[0], (C, C), C, 3 * C) * scale   # fold attention scale (weight)
        bq = jnp.zeros((1, C), jnp.float32) * scale      # fold attention scale (bias)
        wk_t = xavier(lk[1], (C, C), C, 3 * C)
        wv_t = xavier(lk[2], (C, C), C, 3 * C)
        wo_t = xavier(lk[3], (C, C), C, C)
        layers.append(dict(
            wq=wq_t.astype(jnp.bfloat16), bq=bq,
            wk=wk_t.astype(jnp.bfloat16), bk=jnp.zeros((1, C), jnp.float32),
            wv=wv_t.astype(jnp.bfloat16), bv=jnp.zeros((1, C), jnp.float32),
            wo=wo_t.astype(jnp.bfloat16), bo=jnp.zeros((1, C), jnp.float32),
            ln1_g=jnp.ones((1, C), jnp.float32),
            ln1_b=jnp.zeros((1, C), jnp.float32),
            w1=xavier(lk[4], (C, dim_feedforward), C, dim_feedforward).astype(jnp.bfloat16),
            b1=jnp.zeros((1, dim_feedforward), jnp.float32),
            w2=xavier(lk[5], (dim_feedforward, C), dim_feedforward, C).astype(jnp.bfloat16),
            b2=jnp.zeros((1, C), jnp.float32),
            ln2_g=jnp.ones((1, C), jnp.float32),
            ln2_b=jnp.zeros((1, C), jnp.float32),
        ))
    return dict(proj_w=proj_w, proj_b=proj_b,
                gn_gamma=gn_gamma, gn_beta=gn_beta, layers=layers)


# --------------------------------------------------------------------------
# Full forward pass (NCHW in -> NCHW out, like the PyTorch module).
# --------------------------------------------------------------------------
def transformer_enc_forward(x_nchw, params, nhead, num_groups):
    B, Cin, Himg, Wimg = x_nchw.shape
    S = Himg * Wimg
    x = jnp.transpose(x_nchw, (0, 2, 3, 1)).reshape(B, S, Cin)       # (B, S, Cin)
    y = input_proj_groupnorm(x, params["proj_w"], params["proj_b"],
                             params["gn_gamma"], params["gn_beta"], num_groups)
    C = y.shape[-1]
    pos = position_embedding_sine(Himg, Wimg, C // 2)                # (1, S, C)

    # Pad S up to a multiple of the query tile AFTER GroupNorm (so its
    # statistics are exact); padded keys are masked inside the kernel.
    tq = _choose_qtile(S)
    S_pad = _ceil_div(S, tq) * tq
    pad = S_pad - S
    if pad:
        y = jnp.pad(y, ((0, 0), (0, pad), (0, 0)))
        pos = jnp.pad(pos, ((0, 0), (0, pad), (0, 0)))

    # TODO(synk): fuse multiple encoder layers into a single pallas_call
    # (activation resident in VMEM across layers) to cut per-layer HBM traffic.
    for lp in params["layers"]:
        y = encoder_layer(y, pos, lp, nhead, tq, S)
    if pad:
        y = y[:, :S, :]
    return jnp.transpose(y, (0, 2, 1)).reshape(B, C, Himg, Wimg)


if __name__ == "__main__":
    # NOTE: real configs should use C (and F) as multiples of 128 for
    # lane-dense stores; the toy C=64 is for correctness only.
    B, in_channels, Himg, Wimg = 2, 4, 16, 16
    conv_dim, nhead, num_layers, dim_ff = 64, 4, 2, 128
    num_groups = 32  # GroupNorm(32, conv_dim) requires conv_dim % 32 == 0

    key = jax.random.PRNGKey(0)
    pkey, xkey = jax.random.split(key)
    params = make_params(pkey, in_channels, conv_dim, nhead, num_layers, dim_ff)
    x = jax.random.normal(xkey, (B, in_channels, Himg, Wimg), jnp.float32)

    out = transformer_enc_forward(x, params, nhead, num_groups)
    out = jax.block_until_ready(out)
    assert out.shape == (B, conv_dim, Himg, Wimg)
    assert bool(jnp.all(jnp.isfinite(out)))
    print("KERNEL_OK")
</pallas_src>

<mosaic_0001>
module attributes {stable_mosaic.version = 11 : i64} {
  func.func @proj_gn_kernel(%arg0: i32, %arg1: memref<1x256x16xbf16, #tpu.memory_space<vmem>>, %arg2: memref<16x64xbf16, #tpu.memory_space<vmem>>, %arg3: memref<1x64xf32, #tpu.memory_space<vmem>>, %arg4: memref<64x64xf32, #tpu.memory_space<vmem>>, %arg5: memref<1x64xf32, #tpu.memory_space<vmem>>, %arg6: memref<1x64xf32, #tpu.memory_space<vmem>>, %arg7: memref<1x256x64xf32, #tpu.memory_space<vmem>>) attributes {dimension_semantics = [#tpu.dimension_semantics<parallel>], iteration_bounds = array<i64: 2>, scalar_prefetch = 0 : i64, scratch_operands = 0 : i64, tpu.core_type = #tpu.core_type<tc>, window_params = [{transform_indices = @transform_0, window_bounds = array<i64: 1, 256, 16>}, {pipeline_mode = #tpu.pipeline_mode<synchronous>, transform_indices = @transform_1, window_bounds = array<i64: 16, 64>}, {pipeline_mode = #tpu.pipeline_mode<synchronous>, transform_indices = @transform_2, window_bounds = array<i64: 1, 64>}, {pipeline_mode = #tpu.pipeline_mode<synchronous>, transform_indices = @transform_3, window_bounds = array<i64: 64, 64>}, {pipeline_mode = #tpu.pipeline_mode<synchronous>, transform_indices = @transform_4, window_bounds = array<i64: 1, 64>}, {pipeline_mode = #tpu.pipeline_mode<synchronous>, transform_indices = @transform_5, window_bounds = array<i64: 1, 64>}, {transform_indices = @transform_6, window_bounds = array<i64: 1, 256, 64>}]} {
    %c0 = arith.constant 0 : index
    %c0_0 = arith.constant 0 : index
    %c0_1 = arith.constant 0 : index
    %0 = vector.load %arg1[%c0, %c0_0, %c0_1] : memref<1x256x16xbf16, #tpu.memory_space<vmem>>, vector<1x256x16xbf16>
    %1 = vector.shape_cast %0 : vector<1x256x16xbf16> to vector<256x16xbf16>
    %c0_2 = arith.constant 0 : index
    %c0_3 = arith.constant 0 : index
    %2 = vector.load %arg2[%c0_2, %c0_3] : memref<16x64xbf16, #tpu.memory_space<vmem>>, vector<16x64xbf16>
    %cst = arith.constant dense<0.000000e+00> : vector<256x64xf32>
    %3 = tpu.matmul %1, %2, %cst {dimension_numbers = #tpu.dot_dimension_numbers<[1], [0], [0], [1], [0, 0, 1, 1], [], []>} : vector<256x16xbf16>, vector<16x64xbf16>, vector<256x64xf32> -> vector<256x64xf32>
    %c0_4 = arith.constant 0 : index
    %c0_5 = arith.constant 0 : index
    %4 = vector.load %arg3[%c0_4, %c0_5] : memref<1x64xf32, #tpu.memory_space<vmem>>, vector<1x64xf32>
    %5 = vector.broadcast %4 : vector<1x64xf32> to vector<256x64xf32>
    %6 = arith.addf %3, %5 : vector<256x64xf32>
    %cst_6 = arith.constant 1.000000e+00 : bf16
    %7 = vector.broadcast %cst_6 : bf16 to vector<1x256xbf16>
    %8 = arith.truncf %6 : vector<256x64xf32> to vector<256x64xbf16>
    %cst_7 = arith.constant dense<0.000000e+00> : vector<1x64xf32>
    %9 = tpu.matmul %7, %8, %cst_7 {dimension_numbers = #tpu.dot_dimension_numbers<[1], [0], [0], [1], [0, 0, 1, 1], [], []>} : vector<1x256xbf16>, vector<256x64xbf16>, vector<1x64xf32> -> vector<1x64xf32>
    %cst_8 = arith.constant 3.906250e-03 : f32
    %10 = vector.broadcast %cst_8 : f32 to vector<1x64xf32>
    %11 = arith.mulf %9, %10 : vector<1x64xf32>
    %c0_9 = arith.constant 0 : index
    %c0_10 = arith.constant 0 : index
    %12 = vector.load %arg4[%c0_9, %c0_10] : memref<64x64xf32, #tpu.memory_space<vmem>>, vector<64x64xf32>
    %cst_11 = arith.constant dense<0.000000e+00> : vector<1x64xf32>
    %13 = tpu.matmul %11, %12, %cst_11 {dimension_numbers = #tpu.dot_dimension_numbers<[1], [0], [0], [1], [0, 0, 1, 1], [], []>} : vector<1x64xf32>, vector<64x64xf32>, vector<1x64xf32> -> vector<1x64xf32>
    %14 = vector.broadcast %13 : vector<1x64xf32> to vector<256x64xf32>
    %15 = arith.subf %6, %14 : vector<256x64xf32>
    %16 = arith.truncf %15 : vector<256x64xf32> to vector<256x64xbf16>
    %17 = arith.mulf %16, %16 : vector<256x64xbf16>
    %cst_12 = arith.constant dense<0.000000e+00> : vector<1x64xf32>
    %18 = tpu.matmul %7, %17, %cst_12 {dimension_numbers = #tpu.dot_dimension_numbers<[1], [0], [0], [1], [0, 0, 1, 1], [], []>} : vector<1x256xbf16>, vector<256x64xbf16>, vector<1x64xf32> -> vector<1x64xf32>
    %cst_13 = arith.constant 3.906250e-03 : f32
    %19 = vector.broadcast %cst_13 : f32 to vector<1x64xf32>
    %20 = arith.mulf %18, %19 : vector<1x64xf32>
    %c0_14 = arith.constant 0 : index
    %c0_15 = arith.constant 0 : index
    %21 = vector.load %arg4[%c0_14, %c0_15] : memref<64x64xf32, #tpu.memory_space<vmem>>, vector<64x64xf32>
    %cst_16 = arith.constant dense<0.000000e+00> : vector<1x64xf32>
    %22 = tpu.matmul %20, %21, %cst_16 {dimension_numbers = #tpu.dot_dimension_numbers<[1], [0], [0], [1], [0, 0, 1, 1], [], []>} : vector<1x64xf32>, vector<64x64xf32>, vector<1x64xf32> -> vector<1x64xf32>
    %cst_17 = arith.constant 9.99999974E-6 : f32
    %23 = vector.broadcast %cst_17 : f32 to vector<1x64xf32>
    %24 = arith.addf %22, %23 : vector<1x64xf32>
    %25 = math.rsqrt %24 : vector<1x64xf32>
    %26 = vector.broadcast %25 : vector<1x64xf32> to vector<256x64xf32>
    %27 = arith.mulf %15, %26 : vector<256x64xf32>
    %c0_18 = arith.constant 0 : index
    %c0_19 = arith.constant 0 : index
    %28 = vector.load %arg5[%c0_18, %c0_19] : memref<1x64xf32, #tpu.memory_space<vmem>>, vector<1x64xf32>
    %29 = vector.broadcast %28 : vector<1x64xf32> to vector<256x64xf32>
    %30 = arith.mulf %27, %29 : vector<256x64xf32>
    %c0_20 = arith.constant 0 : index
    %c0_21 = arith.constant 0 : index
    %31 = vector.load %arg6[%c0_20, %c0_21] : memref<1x64xf32, #tpu.memory_space<vmem>>, vector<1x64xf32>
    %32 = vector.broadcast %31 : vector<1x64xf32> to vector<256x64xf32>
    %33 = arith.addf %30, %32 : vector<256x64xf32>
    %c0_22 = arith.constant 0 : index
    %c0_23 = arith.constant 0 : index
    %c0_24 = arith.constant 0 : index
    %34 = vector.load %arg7[%c0_22, %c0_23, %c0_24] : memref<1x256x64xf32, #tpu.memory_space<vmem>>, vector<1x256x64xf32>
    %35 = vector.shape_cast %34 : vector<1x256x64xf32> to vector<256x64xf32>
    %36 = vector.shape_cast %33 : vector<256x64xf32> to vector<1x256x64xf32>
    tpu.vector_store %arg7[%c0_22, %c0_23, %c0_24], %36 {strides = array<i32>} : memref<1x256x64xf32, #tpu.memory_space<vmem>>, vector<1x256x64xf32>,
    return
  }
  func.func @transform_0(%arg0: i32) -> (i32, i32, i32) {
    %c0_i32 = arith.constant 0 : i32
    %c0_i32_0 = arith.constant 0 : i32
    %c0_i32_1 = arith.constant 0 : i32
    return %arg0, %c0_i32, %c0_i32_0 : i32, i32, i32
  }
  func.func @transform_1(%arg0: i32) -> (i32, i32) {
    %c0_i32 = arith.constant 0 : i32
    %c0_i32_0 = arith.constant 0 : i32
    %c0_i32_1 = arith.constant 0 : i32
    return %c0_i32, %c0_i32_0 : i32, i32
  }
  func.func @transform_2(%arg0: i32) -> (i32, i32) {
    %c0_i32 = arith.constant 0 : i32
    %c0_i32_0 = arith.constant 0 : i32
    %c0_i32_1 = arith.constant 0 : i32
    return %c0_i32, %c0_i32_0 : i32, i32
  }
  func.func @transform_3(%arg0: i32) -> (i32, i32) {
    %c0_i32 = arith.constant 0 : i32
    %c0_i32_0 = arith.constant 0 : i32
    %c0_i32_1 = arith.constant 0 : i32
    return %c0_i32, %c0_i32_0 : i32, i32
  }
  func.func @transform_4(%arg0: i32) -> (i32, i32) {
    %c0_i32 = arith.constant 0 : i32
    %c0_i32_0 = arith.constant 0 : i32
    %c0_i32_1 = arith.constant 0 : i32
    return %c0_i32, %c0_i32_0 : i32, i32
  }
  func.func @transform_5(%arg0: i32) -> (i32, i32) {
    %c0_i32 = arith.constant 0 : i32
    %c0_i32_0 = arith.constant 0 : i32
    %c0_i32_1 = arith.constant 0 : i32
    return %c0_i32, %c0_i32_0 : i32, i32
  }
  func.func @transform_6(%arg0: i32) -> (i32, i32, i32) {
    %c0_i32 = arith.constant 0 : i32
    %c0_i32_0 = arith.constant 0 : i32
    %c0_i32_1 = arith.constant 0 : i32
    return %arg0, %c0_i32, %c0_i32_0 : i32, i32, i32
  }
}

</mosaic_0001>

<llo_original>
// kernel: tpu_custom_call.1
$region0: #{tpu_custom_call.1}
  #allocation0 [shape = 'u32[]', space=smem, size = 0x4, offset = 0x4, fixed_abs, tag = 'smem constant byte address 0x4 - core index']
  #allocation1 [shape = 'u32[144,128]{1,0:T(1,128)}', space=vmem, size = 0x12000, scoped, tag = 'internal scratch']
  %s0 = inlined_call_operand.vmem [shape: bf16[2,256,16], index: 0, kind: input, shape index: {}]
  %s1 = inlined_call_operand.vmem [shape: bf16[16,64], index: 1, kind: input, shape index: {}]
  %s2 = inlined_call_operand.vmem [shape: f32[1,64], index: 2, kind: input, shape index: {}]
  %s3 = inlined_call_operand.vmem [shape: f32[64,64], index: 3, kind: input, shape index: {}]
  %s4 = inlined_call_operand.vmem [shape: f32[1,64], index: 4, kind: input, shape index: {}]
  %s5 = inlined_call_operand.vmem [shape: f32[1,64], index: 5, kind: input, shape index: {}]
  %s6 = inlined_call_operand.vmem [shape: f32[2,256,64], index: 6, kind: output, shape index: {}]
  %s7 = sld [smem:[#allocation0]]
  $region57: #{tpu_custom_call.1} parent=0
    _
  %s9 = ssub.s32 1, %s7
  %s10 = scalar_select 0, %s9, %s7
  loop: start=0, step=1, limit=4
  $region2: #{tpu_custom_call.1} parent=0 // loop_pre_header
    _
  $region3: #{tpu_custom_call.1} parent=0 // loop_header
    %s12 = sphi 0, %s16
    %p13 = scmp.ge.s32.totalorder %s12, 4
    %s22 = sphi 0, %s24
    %s25 = sphi 0, %s22
    %s26 = sphi 0, %s25
    %s42 = sphi 0, %s26
    %s46 = sphi 0, %s46
    %s48 = sphi 0, %s46
    %s49 = sphi 0, %s48
    %s63 = sphi 0, %s49
    %s67 = sphi 0, %s67
    %s69 = sphi 0, %s67
    %s70 = sphi 0, %s69
    %s84 = sphi 0, %s70
    %s88 = sphi 0, %s88
    %s90 = sphi 0, %s88
    %s91 = sphi 0, %s90
    %s105 = sphi 0, %s91
    %s109 = sphi 0, %s109
    %s111 = sphi 0, %s109
    %s112 = sphi 0, %s111
    %s126 = sphi 0, %s112
    %s130 = sphi 0, %s130
    %s132 = sphi 0, %s130
    %s133 = sphi 0, %s132
    %s147 = sphi 0, %s133
    %s153 = sphi 0, %s155
    %s156 = sphi 0, %s153
    %s157 = sphi 0, %s156
    %s173 = sphi 0, %s157
  $region4: #{tpu_custom_call.1} parent=0 // loop_header_branch
    %15 = sbr.rel (%p13) target = $region8
  $region5: #{tpu_custom_call.1} parent=0 // loop_body
    %s17 = ssub.s32 %s12, 1
    %s18 = ssub.s32 %s12, 2
    %s19 = sadd.s32 %s12, 1
    %s20 = ssub.s32 %s12, %s19
    %p21 = scmp.eq.s32.totalorder %s20, 0
    %s23 = sadd.s32 %s22, 1
    %s24 = scalar_select %p21, %s22, %s23
    %p27 = pneg %p21
    %p28 = scmp.eq.s32.totalorder %s12, 1
    %p29 = por %p27, %p28
    %p30 = scmp.ne.s32.totalorder %s22, %s25
    %p31 = scmp.eq.s32.totalorder %s12, 0
    %p32 = por %p30, %p31
    %p33 = scmp.ne.s32.totalorder %s22, %s25
    %p34 = scmp.eq.s32.totalorder %s17, 1
    %p35 = por %p33, %p34
    %p36 = scmp.ne.s32.totalorder %s25, %s26
    %p37 = scmp.eq.s32.totalorder %s17, 0
    %p38 = por %p36, %p37
    %p39 = scmp.ne.s32.totalorder %s25, %s26
    %p40 = scmp.eq.s32.totalorder %s18, 1
    %p41 = por %p39, %p40
    %p43 = scmp.ne.s32.totalorder %s26, %s42
    %p44 = scmp.eq.s32.totalorder %s18, 0
    %p45 = por %p43, %p44
    %s47 = sadd.s32 %s46, 1
    %p50 = scmp.eq.s32.totalorder %s12, 1
    %p51 = scmp.ne.s32.totalorder %s46, %s48
    %p52 = scmp.eq.s32.totalorder %s12, 0
    %p53 = por %p51, %p52
    %p54 = scmp.ne.s32.totalorder %s46, %s48
    %p55 = scmp.eq.s32.totalorder %s17, 1
    %p56 = por %p54, %p55
    %p57 = scmp.ne.s32.totalorder %s48, %s49
    %p58 = scmp.eq.s32.totalorder %s17, 0
    %p59 = por %p57, %p58
    %p60 = scmp.ne.s32.totalorder %s48, %s49
    %p61 = scmp.eq.s32.totalorder %s18, 1
    %p62 = por %p60, %p61
    %p64 = scmp.ne.s32.totalorder %s49, %s63
    %p65 = scmp.eq.s32.totalorder %s18, 0
    %p66 = por %p64, %p65
    %s68 = sadd.s32 %s67, 1
    %p71 = scmp.eq.s32.totalorder %s12, 1
    %p72 = scmp.ne.s32.totalorder %s67, %s69
    %p73 = scmp.eq.s32.totalorder %s12, 0
    %p74 = por %p72, %p73
    %p75 = scmp.ne.s32.totalorder %s67, %s69
    %p76 = scmp.eq.s32.totalorder %s17, 1
    %p77 = por %p75, %p76
    %p78 = scmp.ne.s32.totalorder %s69, %s70
    %p79 = scmp.eq.s32.totalorder %s17, 0
    %p80 = por %p78, %p79
    %p81 = scmp.ne.s32.totalorder %s69, %s70
    %p82 = scmp.eq.s32.totalorder %s18, 1
    %p83 = por %p81, %p82
    %p85 = scmp.ne.s32.totalorder %s70, %s84
    %p86 = scmp.eq.s32.totalorder %s18, 0
    %p87 = por %p85, %p86
    %s89 = sadd.s32 %s88, 1
    %p92 = scmp.eq.s32.totalorder %s12, 1
    %p93 = scmp.ne.s32.totalorder %s88, %s90
    %p94 = scmp.eq.s32.totalorder %s12, 0
    %p95 = por %p93, %p94
    %p96 = scmp.ne.s32.totalorder %s88, %s90
    %p97 = scmp.eq.s32.totalorder %s17, 1
    %p98 = por %p96, %p97
    %p99 = scmp.ne.s32.totalorder %s90, %s91
    %p100 = scmp.eq.s32.totalorder %s17, 0
    %p101 = por %p99, %p100
    %p102 = scmp.ne.s32.totalorder %s90, %s91
    %p103 = scmp.eq.s32.totalorder %s18, 1
    %p104 = por %p102, %p103
    %p106 = scmp.ne.s32.totalorder %s91, %s105
    %p107 = scmp.eq.s32.totalorder %s18, 0
    %p108 = por %p106, %p107
    %s110 = sadd.s32 %s109, 1
    %p113 = scmp.eq.s32.totalorder %s12, 1
    %p114 = scmp.ne.s32.totalorder %s109, %s111
    %p115 = scmp.eq.s32.totalorder %s12, 0
    %p116 = por %p114, %p115
    %p117 = scmp.ne.s32.totalorder %s109, %s111
    %p118 = scmp.eq.s32.totalorder %s17, 1
    %p119 = por %p117, %p118
    %p120 = scmp.ne.s32.totalorder %s111, %s112
    %p121 = scmp.eq.s32.totalorder %s17, 0
    %p122 = por %p120, %p121
    %p123 = scmp.ne.s32.totalorder %s111, %s112
    %p124 = scmp.eq.s32.totalorder %s18, 1
    %p125 = por %p123, %p124
    %p127 = scmp.ne.s32.totalorder %s112, %s126
    %p128 = scmp.eq.s32.totalorder %s18, 0
    %p129 = por %p127, %p128
    %s131 = sadd.s32 %s130, 1
    %p134 = scmp.eq.s32.totalorder %s12, 1
    %p135 = scmp.ne.s32.totalorder %s130, %s132
    %p136 = scmp.eq.s32.totalorder %s12, 0
    %p137 = por %p135, %p136
    %p138 = scmp.ne.s32.totalorder %s130, %s132
    %p139 = scmp.eq.s32.totalorder %s17, 1
    %p140 = por %p138, %p139
    %p141 = scmp.ne.s32.totalorder %s132, %s133
    %p142 = scmp.eq.s32.totalorder %s17, 0
    %p143 = por %p141, %p142
    %p144 = scmp.ne.s32.totalorder %s132, %s133
    %p145 = scmp.eq.s32.totalorder %s18, 1
    %p146 = por %p144, %p145
    %p148 = scmp.ne.s32.totalorder %s133, %s147
    %p149 = scmp.eq.s32.totalorder %s18, 0
    %p150 = por %p148, %p149
    %s151 = ssub.s32 %s12, %s19
    %p152 = scmp.eq.s32.totalorder %s151, 0
    %s154 = sadd.s32 %s153, 1
    %s155 = scalar_select %p152, %s153, %s154
    %p158 = pneg %p152
    %p159 = scmp.eq.s32.totalorder %s12, 1
    %p160 = por %p158, %p159
    %p161 = scmp.ne.s32.totalorder %s153, %s156
    %p162 = scmp.eq.s32.totalorder %s12, 0
    %p163 = por %p161, %p162
    %p164 = scmp.ne.s32.totalorder %s153, %s156
    %p165 = scmp.eq.s32.totalorder %s17, 1
    %p166 = por %p164, %p165
    %p167 = scmp.ne.s32.totalorder %s156, %s157
    %p168 = scmp.eq.s32.totalorder %s17, 0
    %p169 = por %p167, %p168
    %p170 = scmp.ne.s32.totalorder %s156, %s157
    %p171 = scmp.eq.s32.totalorder %s18, 1
    %p172 = por %p170, %p171
    %p174 = scmp.ne.s32.totalorder %s157, %s173
    %p175 = scmp.eq.s32.totalorder %s18, 0
    %p176 = por %p174, %p175
    %p177 = scmp.le.s32.totalorder 1, %s12
    %p178 = scmp.lt.s32.totalorder %s12, 3
    %p179 = pnand %p177, %p178
    %p180 = pneg %p179
    // Predicated region
    $region9: #{tpu_custom_call.1} parent=5 // pred_check
      _
    $region10: #{tpu_custom_call.1} parent=5 // pred_check_branch
      %182 = sbr.rel (%p179) target = $region12
    $region11: #{tpu_custom_call.1} parent=5 // pred_region
      %s183 = ssub.s32 %s12, 1
      // Predicated region
      $region13: #{tpu_custom_call.1} parent=11 // pred_check
        %p184 = pneg %p59
      $region14: #{tpu_custom_call.1} parent=11 // pred_check_branch
        %186 = sbr.rel (%p184) target = $region16
      $region15: #{tpu_custom_call.1} parent=11 // pred_region
        _
      $region16: #{tpu_custom_call.1} parent=11 // pred_fallthru
        _
      // Predicated region
      $region17: #{tpu_custom_call.1} parent=11 // pred_check
        %p187 = pneg %p80
      $region18: #{tpu_custom_call.1} parent=11 // pred_check_branch
        %189 = sbr.rel (%p187) target = $region20
      $region19: #{tpu_custom_call.1} parent=11 // pred_region
        _
      $region20: #{tpu_custom_call.1} parent=11 // pred_fallthru
        _
      // Predicated region
      $region21: #{tpu_custom_call.1} parent=11 // pred_check
        %p190 = pneg %p101
      $region22: #{tpu_custom_call.1} parent=11 // pred_check_branch
        %192 = sbr.rel (%p190) target = $region24
      $region23: #{tpu_custom_call.1} parent=11 // pred_region
        _
      $region24: #{tpu_custom_call.1} parent=11 // pred_fallthru
        _
      // Predicated region
      $region25: #{tpu_custom_call.1} parent=11 // pred_check
        %p193 = pneg %p122
      $region26: #{tpu_custom_call.1} parent=11 // pred_check_branch
        %195 = sbr.rel (%p193) target = $region28
      $region27: #{tpu_custom_call.1} parent=11 // pred_region
        _
      $region28: #{tpu_custom_call.1} parent=11 // pred_fallthru
        _
      // Predicated region
      $region29: #{tpu_custom_call.1} parent=11 // pred_check
        %p196 = pneg %p143
      $region30: #{tpu_custom_call.1} parent=11 // pred_check_branch
        %198 = sbr.rel (%p196) target = $region32
      $region31: #{tpu_custom_call.1} parent=11 // pred_region
        _
      $region32: #{tpu_custom_call.1} parent=11 // pred_fallthru
        _
    $region12: #{tpu_custom_call.1} parent=5 // pred_fallthru
      _
    %p199 = scmp.lt.s32.totalorder %s12, 2
    // Predicated region
    $region33: #{tpu_custom_call.1} parent=5 // pred_check
      %p200 = pneg %p199
    $region34: #{tpu_custom_call.1} parent=5 // pred_check_branch
      %202 = sbr.rel (%p200) target = $region36
    $region35: #{tpu_custom_call.1} parent=5 // pred_region
      // Predicated region
      $region37: #{tpu_custom_call.1} parent=35 // pred_check
        %p203 = pneg %p32
      $region38: #{tpu_custom_call.1} parent=35 // pred_check_branch
        %205 = sbr.rel (%p203) target = $region40
      $region39: #{tpu_custom_call.1} parent=35 // pred_region
        %p206 = scmp.lt.s32.totalorder %s12, 1
        %s207 = scalar_select %p206, %s12, 1
        %s208 = smul.addr %s207, 32
        %s209 = smul.addr %s208, 4
        %s210 = scalar_lea.vmem %s0, %s209
      $region40: #{tpu_custom_call.1} parent=35 // pred_fallthru
        _
    $region36: #{tpu_custom_call.1} parent=5 // pred_fallthru
      _
    %p211 = scmp.le.s32.totalorder 1, %s12
    %p212 = scmp.lt.s32.totalorder %s12, 3
    %p213 = pnand %p211, %p212
    %p214 = pneg %p213
    // Predicated region
    $region41: #{tpu_custom_call.1} parent=5 // pred_check
      _
    $region42: #{tpu_custom_call.1} parent=5 // pred_check_branch
      %216 = sbr.rel (%p213) target = $region44
    $region43: #{tpu_custom_call.1} parent=5 // pred_region
      %s217 = ssub.s32 %s12, 1
      %p218 = scmp.lt.s32.totalorder %s17, 1
      %s219 = scalar_select %p218, %s17, 1
      %s220 = smul.addr %s219, 32
      %s221 = smul.addr %s220, 4
      %s222 = scalar_lea.vmem %s0, %s221
      %p223 = pneg %p38
      %p224 = pneg %p35
      %p225 = pneg %p59
      %p226 = pneg %p56
      %p227 = pneg %p80
      %p228 = pneg %p77
      %p229 = pneg %p101
      %p230 = pneg %p98
      %p231 = pneg %p122
      %p232 = pneg %p119
      %p233 = pneg %p143
      %p234 = pneg %p140
      %p235 = pneg %p169
      %p236 = pneg %p166
      %p237 = scmp.lt.s32.totalorder %s17, 1
      %s238 = scalar_select %p237, %s17, 1
      %s239 = smul.addr %s238, 32
      %s240 = smul.addr %s239, 8
      %s241 = scalar_lea.vmem %s6, %s240
      %p242 = scmp.lt.s32.totalorder %s17, 1
      %s243 = scalar_select %p242, %s17, 1
      %s244 = smul.addr %s243, 32
      %s245 = smul.addr %s244, 4
      %s246 = scalar_lea.vmem %s0, %s245
      %p247 = scmp.lt.s32.totalorder %s17, 1
      %s248 = scalar_select %p247, %s17, 1
      %s249 = smul.addr %s248, 32
      %s250 = smul.addr %s249, 8
      %s251 = scalar_lea.vmem %s6, %s250
      %v254 = vld [vmem:[%s246] sm:$0xf]
      %v255 = vld [vmem:[%s246 + $0x4] sm:$0xf]
      %v256 = vld [vmem:[%s246 + $0x8] sm:$0xf]
      %v257 = vld [vmem:[%s246 + $0xc] sm:$0xf]
      %v258 = vld [vmem:[%s246 + $0x10] sm:$0xf]
      %v259 = vld [vmem:[%s246 + $0x14] sm:$0xf]
      %v260 = vld [vmem:[%s246 + $0x18] sm:$0xf]
      %v261 = vld [vmem:[%s246 + $0x1c] sm:$0xf]
      %v262 = vld [vmem:[%s246 + $0x20] sm:$0xf]
      %v263 = vld [vmem:[%s246 + $0x24] sm:$0xf]
      %v264 = vld [vmem:[%s246 + $0x28] sm:$0xf]
      %v265 = vld [vmem:[%s246 + $0x2c] sm:$0xf]
      %v266 = vld [vmem:[%s246 + $0x30] sm:$0xf]
      %v267 = vld [vmem:[%s246 + $0x34] sm:$0xf]
      %v268 = vld [vmem:[%s246 + $0x38] sm:$0xf]
      %v269 = vld [vmem:[%s246 + $0x3c] sm:$0xf]
      %v270 = vld [vmem:[%s246 + $0x40] sm:$0xf]
      %v271 = vld [vmem:[%s246 + $0x44] sm:$0xf]
      %v272 = vld [vmem:[%s246 + $0x48] sm:$0xf]
      %v273 = vld [vmem:[%s246 + $0x4c] sm:$0xf]
      %v274 = vld [vmem:[%s246 + $0x50] sm:$0xf]
      %v275 = vld [vmem:[%s246 + $0x54] sm:$0xf]
      %v276 = vld [vmem:[%s246 + $0x58] sm:$0xf]
      %v277 = vld [vmem:[%s246 + $0x5c] sm:$0xf]
      %v278 = vld [vmem:[%s246 + $0x60] sm:$0xf]
      %v279 = vld [vmem:[%s246 + $0x64] sm:$0xf]
      %v280 = vld [vmem:[%s246 + $0x68] sm:$0xf]
      %v281 = vld [vmem:[%s246 + $0x6c] sm:$0xf]
      %v282 = vld [vmem:[%s246 + $0x70] sm:$0xf]
      %v283 = vld [vmem:[%s246 + $0x74] sm:$0xf]
      %v284 = vld [vmem:[%s246 + $0x78] sm:$0xf]
      %v285 = vld [vmem:[%s246 + $0x7c] sm:$0xf]
      %v286 = vld [vmem:[%s1] sm:$0xf]
      %v287 = vld [vmem:[%s1 + $0x4] sm:$0xf]
      %v288 = vld [vmem:[%s2] sm:$0x1]
      %v290 = vlaneseq
      %v291 = vshrl.u32 %v290, 7
      %v292 = vsub.s32 0, %v291
      %v293 = vrot.slane %v288, %v292
      %v327 = vunpack.c.l.b16 %v254
      %v328 = vunpack.c.l.b16 %v255
      %v329 = vunpack.c.l.b16 %v256
      %v330 = vunpack.c.l.b16 %v257
      %v331 = vunpack.c.l.b16 %v258
      %v332 = vunpack.c.l.b16 %v259
      %v333 = vunpack.c.l.b16 %v260
      %v334 = vunpack.c.l.b16 %v261
      %v335 = vunpack.c.l.b16 %v262
      %v336 = vunpack.c.l.b16 %v263
      %v337 = vunpack.c.l.b16 %v264
      %v338 = vunpack.c.l.b16 %v265
      %v339 = vunpack.c.l.b16 %v266
      %v340 = vunpack.c.l.b16 %v267
      %v341 = vunpack.c.l.b16 %v268
      %v342 = vunpack.c.l.b16 %v269
      %v343 = vunpack.c.l.b16 %v270
      %v344 = vunpack.c.l.b16 %v271
      %v345 = vunpack.c.l.b16 %v272
      %v346 = vunpack.c.l.b16 %v273
      %v347 = vunpack.c.l.b16 %v274
      %v348 = vunpack.c.l.b16 %v275
      %v349 = vunpack.c.l.b16 %v276
      %v350 = vunpack.c.l.b16 %v277
      %v351 = vunpack.c.l.b16 %v278
      %v352 = vunpack.c.l.b16 %v279
      %v353 = vunpack.c.l.b16 %v280
      %v354 = vunpack.c.l.b16 %v281
      %v355 = vunpack.c.l.b16 %v282
      %v356 = vunpack.c.l.b16 %v283
      %v357 = vunpack.c.l.b16 %v284
      %v358 = vunpack.c.l.b16 %v285
      %v359 = vpack.c.b16 %v328, %v327
      %v360 = vpack.c.b16 %v330, %v329
      %v361 = vpack.c.b16 %v332, %v331
      %v362 = vpack.c.b16 %v334, %v333
      %v363 = vpack.c.b16 %v336, %v335
      %v364 = vpack.c.b16 %v338, %v337
      %v365 = vpack.c.b16 %v340, %v339
      %v366 = vpack.c.b16 %v342, %v341
      %v367 = vpack.c.b16 %v344, %v343
      %v368 = vpack.c.b16 %v346, %v345
      %v369 = vpack.c.b16 %v348, %v347
      %v370 = vpack.c.b16 %v350, %v349
      %v371 = vpack.c.b16 %v352, %v351
      %v372 = vpack.c.b16 %v354, %v353
      %v373 = vpack.c.b16 %v356, %v355
      %v374 = vpack.c.b16 %v358, %v357
      %v377 = vunpack.c.l.b16 %v286
      %v378 = vunpack.c.l.b16 %v287
      %v379 = vpack.c.b16 %v378, %v377
      %vm381 = vcmask 130048
      %v383 = vsel %vm381, %v359, 0
      %v386 = vsel %vm381, %v360, 0
      %v389 = vsel %vm381, %v361, 0
      %v392 = vsel %vm381, %v362, 0
      %v395 = vsel %vm381, %v363, 0
      %v398 = vsel %vm381, %v364, 0
      %v401 = vsel %vm381, %v365, 0
      %v404 = vsel %vm381, %v366, 0
      %v407 = vsel %vm381, %v367, 0
      %v410 = vsel %vm381, %v368, 0
      %v413 = vsel %vm381, %v369, 0
      %v416 = vsel %vm381, %v370, 0
      %v419 = vsel %vm381, %v371, 0
      %v422 = vsel %vm381, %v372, 0
      %v425 = vsel %vm381, %v373, 0
      %v428 = vsel %vm381, %v374, 0
      %430 = vmatprep.subr.bf16.mxu0 0
      %431 = vmatpush1.bf16.msra.mxu0 %v379
      %432 = vmatprep.subr.bf16.mxu0 0
      %433 = vmatpush1.bf16.msra.mxu0 0
      %434 = vmatprep.subr.bf16.mxu0 0
      %435 = vmatpush1.bf16.msra.mxu0 0
      %436 = vmatprep.subr.bf16.mxu0 0
      %437 = vmatpush1.bf16.msra.mxu0 0
      %438 = vmatprep.subr.bf16.mxu0 0
      %439 = vmatpush1.bf16.msra.mxu0 0
      %440 = vmatprep.subr.bf16.mxu0 0
      %441 = vmatpush1.bf16.msra.mxu0 0
      %442 = vmatprep.subr.bf16.mxu0 0
      %443 = vmatpush1.bf16.msra.mxu0 0
      %444 = vmatprep.subr.bf16.mxu0 0
      %445 = vmatpush1.bf16.msra.mxu0 0
      %446 = vmatprep.subr.bf16.mxu0 0
      %447 = vmatpush1.bf16.msra.mxu0 0
      %448 = vmatprep.subr.bf16.mxu0 0
      %449 = vmatpush1.bf16.msra.mxu0 0
      %450 = vmatprep.subr.bf16.mxu0 0
      %451 = vmatpush1.bf16.msra.mxu0 0
      %452 = vmatprep.subr.bf16.mxu0 0
      %453 = vmatpush1.bf16.msra.mxu0 0
      %454 = vmatprep.subr.bf16.mxu0 0
      %455 = vmatpush1.bf16.msra.mxu0 0
      %456 = vmatprep.subr.bf16.mxu0 0
      %457 = vmatpush1.bf16.msra.mxu0 0
      %458 = vmatprep.subr.bf16.mxu0 0
      %459 = vmatpush1.bf16.msra.mxu0 0
      %460 = vmatprep.subr.bf16.mxu0 0
      %461 = vmatpush1.bf16.msra.mxu0 0
      %462 = vmatprep.mubr.bf16.mxu0 0
      %463 = vmatmul.mubr.bf16.gmra.mrb[0].mxu0 %v383
      %v464 = vpop.f32.mrb[0].mxu0
      %v465 = vadd.f32 %v293, %v464
      %v466 = vpop.f32.mrb[0].mxu0
      %v467 = vpop.f32.mrb[0].mxu0
      %v468 = vadd.f32 %v293, %v467
      %v469 = vpop.f32.mrb[0].mxu0
      %470 = vmatprep.mubr.bf16.mxu0 0
      %471 = vmatmul.mubr.bf16.gmra.mrb[0].mxu0 %v386
      %v472 = vpop.f32.mrb[0].mxu0
      %v473 = vadd.f32 %v293, %v472
      %v474 = vpop.f32.mrb[0].mxu0
      %v475 = vpop.f32.mrb[0].mxu0
      %v476 = vadd.f32 %v293, %v475
      %v477 = vpop.f32.mrb[0].mxu0
      %478 = vmatprep.mubr.bf16.mxu0 0
      %479 = vmatmul.mubr.bf16.gmra.mrb[0].mxu0 %v389
      %v480 = vpop.f32.mrb[0].mxu0
      %v481 = vadd.f32 %v293, %v480
      %v482 = vpop.f32.mrb[0].mxu0
      %v483 = vpop.f32.mrb[0].mxu0
      %v484 = vadd.f32 %v293, %v483
      %v485 = vpop.f32.mrb[0].mxu0
      %486 = vmatprep.mubr.bf16.mxu0 0
      %487 = vmatmul.mubr.bf16.gmra.mrb[0].mxu0 %v392
      %v488 = vpop.f32.mrb[0].mxu0
      %v489 = vadd.f32 %v293, %v488
      %v490 = vpop.f32.mrb[0].mxu0
      %v491 = vpop.f32.mrb[0].mxu0
      %v492 = vadd.f32 %v293, %v491
      %v493 = vpop.f32.mrb[0].mxu0
      %494 = vmatprep.mubr.bf16.mxu0 0
      %495 = vmatmul.mubr.bf16.gmra.mrb[0].mxu0 %v395
      %v496 = vpop.f32.mrb[0].mxu0
      %v497 = vadd.f32 %v293, %v496
      %v498 = vpop.f32.mrb[0].mxu0
      %v499 = vpop.f32.mrb[0].mxu0
      %v500 = vadd.f32 %v293, %v499
      %v501 = vpop.f32.mrb[0].mxu0
      %502 = vmatprep.mubr.bf16.mxu0 0
      %503 = vmatmul.mubr.bf16.gmra.mrb[0].mxu0 %v398
      %v504 = vpop.f32.mrb[0].mxu0
      %v505 = vadd.f32 %v293, %v504
      %v506 = vpop.f32.mrb[0].mxu0
      %v507 = vpop.f32.mrb[0].mxu0
      %v508 = vadd.f32 %v293, %v507
      %v509 = vpop.f32.mrb[0].mxu0
      %510 = vmatprep.mubr.bf16.mxu0 0
      %511 = vmatmul.mubr.bf16.gmra.mrb[0].mxu0 %v401
      %v512 = vpop.f32.mrb[0].mxu0
      %v513 = vadd.f32 %v293, %v512
      %v514 = vpop.f32.mrb[0].mxu0
      %v515 = vpop.f32.mrb[0].mxu0
      %v516 = vadd.f32 %v293, %v515
      %v517 = vpop.f32.mrb[0].mxu0
      %518 = vmatprep.mubr.bf16.mxu0 0
      %519 = vmatmul.mubr.bf16.gmra.mrb[0].mxu0 %v404
      %v520 = vpop.f32.mrb[0].mxu0
      %v521 = vadd.f32 %v293, %v520
      %v522 = vpop.f32.mrb[0].mxu0
      %v523 = vpop.f32.mrb[0].mxu0
      %v524 = vadd.f32 %v293, %v523
      %v525 = vpop.f32.mrb[0].mxu0
      %526 = vmatprep.mubr.bf16.mxu0 0
      %527 = vmatmul.mubr.bf16.gmra.mrb[0].mxu0 %v407
      %v528 = vpop.f32.mrb[0].mxu0
      %v529 = vadd.f32 %v293, %v528
      %v530 = vpop.f32.mrb[0].mxu0
      %v531 = vpop.f32.mrb[0].mxu0
      %v532 = vadd.f32 %v293, %v531
      %v533 = vpop.f32.mrb[0].mxu0
      %534 = vmatprep.mubr.bf16.mxu0 0
      %535 = vmatmul.mubr.bf16.gmra.mrb[0].mxu0 %v410
      %v536 = vpop.f32.mrb[0].mxu0
      %v537 = vadd.f32 %v293, %v536
      %v538 = vpop.f32.mrb[0].mxu0
      %v539 = vpop.f32.mrb[0].mxu0
      %v540 = vadd.f32 %v293, %v539
      %v541 = vpop.f32.mrb[0].mxu0
      %542 = vmatprep.mubr.bf16.mxu0 0
      %543 = vmatmul.mubr.bf16.gmra.mrb[0].mxu0 %v413
      %v544 = vpop.f32.mrb[0].mxu0
      %v545 = vadd.f32 %v293, %v544
      %v546 = vpop.f32.mrb[0].mxu0
      %v547 = vpop.f32.mrb[0].mxu0
      %v548 = vadd.f32 %v293, %v547
      %v549 = vpop.f32.mrb[0].mxu0
      %550 = vmatprep.mubr.bf16.mxu0 0
      %551 = vmatmul.mubr.bf16.gmra.mrb[0].mxu0 %v416
      %v552 = vpop.f32.mrb[0].mxu0
      %v553 = vadd.f32 %v293, %v552
      %v554 = vpop.f32.mrb[0].mxu0
      %v555 = vpop.f32.mrb[0].mxu0
      %v556 = vadd.f32 %v293, %v555
      %v557 = vpop.f32.mrb[0].mxu0
      %558 = vmatprep.mubr.bf16.mxu0 0
      %559 = vmatmul.mubr.bf16.gmra.mrb[0].mxu0 %v419
      %v560 = vpop.f32.mrb[0].mxu0
      %v561 = vadd.f32 %v293, %v560
      %v562 = vpop.f32.mrb[0].mxu0
      %v563 = vpop.f32.mrb[0].mxu0
      %v564 = vadd.f32 %v293, %v563
      %v565 = vpop.f32.mrb[0].mxu0
      %566 = vmatprep.mubr.bf16.mxu0 0
      %567 = vmatmul.mubr.bf16.gmra.mrb[0].mxu0 %v422
      %v568 = vpop.f32.mrb[0].mxu0
      %v569 = vadd.f32 %v293, %v568
      %v570 = vpop.f32.mrb[0].mxu0
      %v571 = vpop.f32.mrb[0].mxu0
      %v572 = vadd.f32 %v293, %v571
      %v573 = vpop.f32.mrb[0].mxu0
      %574 = vmatprep.mubr.bf16.mxu0 0
      %575 = vmatmul.mubr.bf16.gmra.mrb[0].mxu0 %v425
      %v576 = vpop.f32.mrb[0].mxu0
      %v577 = vadd.f32 %v293, %v576
      %v578 = vpop.f32.mrb[0].mxu0
      %v579 = vpop.f32.mrb[0].mxu0
      %v580 = vadd.f32 %v293, %v579
      %v581 = vpop.f32.mrb[0].mxu0
      %582 = vmatprep.mubr.bf16.mxu0 0
      %583 = vmatmul.mubr.bf16.gmra.mrb[0].mxu0 %v428
      %v584 = vpop.f32.mrb[0].mxu0
      %v585 = vadd.f32 %v293, %v584
      %v586 = vpop.f32.mrb[0].mxu0
      %v587 = vpop.f32.mrb[0].mxu0
      %v588 = vadd.f32 %v293, %v587
      %v589 = vpop.f32.mrb[0].mxu0
      %590 = vdwg.mxu0
      %v591 = vpack.c.bf16 %v468, %v465
      %v592 = vpack.c.bf16 %v476, %v473
      %v593 = vpack.c.bf16 %v484, %v481
      %v594 = vpack.c.bf16 %v492, %v489
      %v595 = vpack.c.bf16 %v500, %v497
      %v596 = vpack.c.bf16 %v508, %v505
      %v597 = vpack.c.bf16 %v516, %v513
      %v598 = vpack.c.bf16 %v524, %v521
      %v599 = vpack.c.bf16 %v532, %v529
      %v600 = vpack.c.bf16 %v540, %v537
      %v601 = vpack.c.bf16 %v548, %v545
      %v602 = vpack.c.bf16 %v556, %v553
      %v603 = vpack.c.bf16 %v564, %v561
      %v604 = vpack.c.bf16 %v572, %v569
      %v605 = vpack.c.bf16 %v580, %v577
      %v606 = vpack.c.bf16 %v588, %v585
      %607 = vmatprep.subr.bf16.mxu0 0
      %608 = vmatpush1.bf16.msra.mxu0 %v591
      %609 = vmatprep.subr.bf16.mxu0 0
      %610 = vmatpush1.bf16.msra.mxu0 %v592
      %611 = vmatprep.subr.bf16.mxu0 0
      %612 = vmatpush1.bf16.msra.mxu0 %v593
      %613 = vmatprep.subr.bf16.mxu0 0
      %614 = vmatpush1.bf16.msra.mxu0 %v594
      %615 = vmatprep.subr.bf16.mxu0 0
      %616 = vmatpush1.bf16.msra.mxu0 %v595
      %617 = vmatprep.subr.bf16.mxu0 0
      %618 = vmatpush1.bf16.msra.mxu0 %v596
      %619 = vmatprep.subr.bf16.mxu0 0
      %620 = vmatpush1.bf16.msra.mxu0 %v597
      %621 = vmatprep.subr.bf16.mxu0 0
      %622 = vmatpush1.bf16.msra.mxu0 %v598
      %623 = vmatprep.subr.bf16.mxu0 0
      %624 = vmatpush1.bf16.msra.mxu0 %v599
      %625 = vmatprep.subr.bf16.mxu0 0
      %626 = vmatpush1.bf16.msra.mxu0 %v600
      %627 = vmatprep.subr.bf16.mxu0 0
      %628 = vmatpush1.bf16.msra.mxu0 %v601
      %629 = vmatprep.subr.bf16.mxu0 0
      %630 = vmatpush1.bf16.msra.mxu0 %v602
      %631 = vmatprep.subr.bf16.mxu0 0
      %632 = vmatpush1.bf16.msra.mxu0 %v603
      %633 = vmatprep.subr.bf16.mxu0 0
      %634 = vmatpush1.bf16.msra.mxu0 %v604
      %635 = vmatprep.subr.bf16.mxu0 0
      %636 = vmatpush1.bf16.msra.mxu0 %v605
      %637 = vmatprep.subr.bf16.mxu0 0
      %638 = vmatpush1.bf16.msra.mxu0 %v606
      %639 = vmatprep.mubr.bf16.mxu0 1065369472
      %640 = vmatmul.mubr.bf16.gmra.mrb[0].mxu0 1065369472
      %v641 = vpop.f32.mrb[0].mxu0
      %v642 = vadd.f32 0.0, %v641
      %v643 = vpop.f32.mrb[0].mxu0
      %v644 = vpop.f32.mrb[0].mxu0
      %v645 = vpop.f32.mrb[0].mxu0
      %646 = vdwg.mxu0
      %v647 = vmul.f32 %v642, 0.00390625
      %v648 = vld [vmem:[%s3] sm:$0xff]
      %v649 = vld [vmem:[%s3 + $0x8] sm:$0xff]
      %v650 = vld [vmem:[%s3 + $0x10] sm:$0xff]
      %v651 = vld [vmem:[%s3 + $0x18] sm:$0xff]
      %v652 = vld [vmem:[%s3 + $0x20] sm:$0xff]
      %v653 = vld [vmem:[%s3 + $0x28] sm:$0xff]
      %v654 = vld [vmem:[%s3 + $0x30] sm:$0xff]
      %v655 = vld [vmem:[%s3 + $0x38] sm:$0xff]
      %vm656 = vcmask 523264
      %v658 = vsel %vm656, %v647, 0
      %660 = vmatprep.subr.mxu0 0.0
      %661 = vmatpush1.msra.mxu0 %v648
      %662 = vmatprep.subr.mxu0 0.0
      %663 = vmatpush1.msra.mxu0 %v649
      %664 = vmatprep.subr.mxu0 0.0
      %665 = vmatpush1.msra.mxu0 %v650
      %666 = vmatprep.subr.mxu0 0.0
      %667 = vmatpush1.msra.mxu0 %v651
      %668 = vmatprep.subr.mxu0 0.0
      %669 = vmatpush1.msra.mxu0 %v652
      %670 = vmatprep.subr.mxu0 0.0
      %671 = vmatpush1.msra.mxu0 %v653
      %672 = vmatprep.subr.mxu0 0.0
      %673 = vmatpush1.msra.mxu0 %v654
      %674 = vmatprep.subr.mxu0 0.0
      %675 = vmatpush1.msra.mxu0 %v655
      %676 = vmatprep.subr.mxu0 0.0
      %677 = vmatpush1.msra.mxu0 0.0
      %678 = vmatprep.subr.mxu0 0.0
      %679 = vmatpush1.msra.mxu0 0.0
      %680 = vmatprep.subr.mxu0 0.0
      %681 = vmatpush1.msra.mxu0 0.0
      %682 = vmatprep.subr.mxu0 0.0
      %683 = vmatpush1.msra.mxu0 0.0
      %684 = vmatprep.subr.mxu0 0.0
      %685 = vmatpush1.msra.mxu0 0.0
      %686 = vmatprep.subr.mxu0 0.0
      %687 = vmatpush1.msra.mxu0 0.0
      %688 = vmatprep.subr.mxu0 0.0
      %689 = vmatpush1.msra.mxu0 0.0
      %690 = vmatprep.subr.mxu0 0.0
      %691 = vmatpush1.msra.mxu0 0.0
      %692 = vmatprep.subr.mxu0 0.0
      %693 = vmatpush1.msra.mxu0 0.0
      %694 = vmatprep.subr.mxu0 0.0
      %695 = vmatpush1.msra.mxu0 0.0
      %696 = vmatprep.subr.mxu0 0.0
      %697 = vmatpush1.msra.mxu0 0.0
      %698 = vmatprep.subr.mxu0 0.0
      %699 = vmatpush1.msra.mxu0 0.0
      %700 = vmatprep.subr.mxu0 0.0
      %701 = vmatpush1.msra.mxu0 0.0
      %702 = vmatprep.subr.mxu0 0.0
      %703 = vmatpush1.msra.mxu0 0.0
      %704 = vmatprep.subr.mxu0 0.0
      %705 = vmatpush1.msra.mxu0 0.0
      %706 = vmatprep.subr.mxu0 0.0
      %707 = vmatpush1.msra.mxu0 0.0
      %708 = vmatprep.subr.mxu0 0.0
      %709 = vmatpush1.msra.mxu0 0.0
      %710 = vmatprep.subr.mxu0 0.0
      %711 = vmatpush1.msra.mxu0 0.0
      %712 = vmatprep.subr.mxu0 0.0
      %713 = vmatpush1.msra.mxu0 0.0
      %714 = vmatprep.subr.mxu0 0.0
      %715 = vmatpush1.msra.mxu0 0.0
      %716 = vmatprep.subr.mxu0 0.0
      %717 = vmatpush1.msra.mxu0 0.0
      %718 = vmatprep.subr.mxu0 0.0
      %719 = vmatpush1.msra.mxu0 0.0
      %720 = vmatprep.subr.mxu0 0.0
      %721 = vmatpush1.msra.mxu0 0.0
      %722 = vmatprep.subr.mxu0 0.0
      %723 = vmatpush1.msra.mxu0 0.0
      %724 = vmatprep.mubr.f32.mxu0 0.0
      %725 = vmatmul.mubr.f32.gmra.mrb[0].mxu0 %v658
      %v726 = vpop.f32.mrb[0].mxu0
      %v727 = vadd.f32 0.0, %v726
      %v728 = vpop.f32.mrb[0].mxu0
      %729 = vdwg.mxu0
      %v730 = vlaneseq
      %v731 = vshrl.u32 %v730, 7
      %v732 = vsub.s32 0, %v731
      %v733 = vrot.slane %v727, %v732
      %v734 = vsub.f32 %v465, %v733
      %v735 = vsub.f32 %v468, %v733
      %v736 = vsub.f32 %v473, %v733
      %v737 = vsub.f32 %v476, %v733
      %v738 = vsub.f32 %v481, %v733
      %v739 = vsub.f32 %v484, %v733
      %v740 = vsub.f32 %v489, %v733
      %v741 = vsub.f32 %v492, %v733
      %v742 = vsub.f32 %v497, %v733
      %v743 = vsub.f32 %v500, %v733
      %v744 = vsub.f32 %v505, %v733
      %v745 = vsub.f32 %v508, %v733
      %v746 = vsub.f32 %v513, %v733
      %v747 = vsub.f32 %v516, %v733
      %v748 = vsub.f32 %v521, %v733
      %v749 = vsub.f32 %v524, %v733
      %v750 = vsub.f32 %v529, %v733
      %v751 = vsub.f32 %v532, %v733
      %v752 = vsub.f32 %v537, %v733
      %v753 = vsub.f32 %v540, %v733
      %v754 = vsub.f32 %v545, %v733
      %v755 = vsub.f32 %v548, %v733
      %v756 = vsub.f32 %v553, %v733
      %v757 = vsub.f32 %v556, %v733
      %v758 = vsub.f32 %v561, %v733
      %v759 = vsub.f32 %v564, %v733
      %v760 = vsub.f32 %v569, %v733
      %v761 = vsub.f32 %v572, %v733
      %v762 = vsub.f32 %v577, %v733
      %v763 = vsub.f32 %v580, %v733
      %v764 = vsub.f32 %v585, %v733
      %v765 = vsub.f32 %v588, %v733
      %v766 = vpack.c.bf16 %v735, %v734
      %v767 = vpack.c.bf16 %v737, %v736
      %v768 = vpack.c.bf16 %v739, %v738
      %v769 = vpack.c.bf16 %v741, %v740
      %v770 = vpack.c.bf16 %v743, %v742
      %v771 = vpack.c.bf16 %v745, %v744
      %v772 = vpack.c.bf16 %v747, %v746
      %v773 = vpack.c.bf16 %v749, %v748
      %v774 = vpack.c.bf16 %v751, %v750
      %v775 = vpack.c.bf16 %v753, %v752
      %v776 = vpack.c.bf16 %v755, %v754
      %v777 = vpack.c.bf16 %v757, %v756
      %v778 = vpack.c.bf16 %v759, %v758
      %v779 = vpack.c.bf16 %v761, %v760
      %v780 = vpack.c.bf16 %v763, %v762
      %v781 = vpack.c.bf16 %v765, %v764
      %v782 = vmul.bf16 %v766, %v766
      %v783 = vmul.bf16 %v767, %v767
      %v784 = vmul.bf16 %v768, %v768
      %v785 = vmul.bf16 %v769, %v769
      %v786 = vmul.bf16 %v770, %v770
      %v787 = vmul.bf16 %v771, %v771
      %v788 = vmul.bf16 %v772, %v772
      %v789 = vmul.bf16 %v773, %v773
      %v790 = vmul.bf16 %v774, %v774
      %v791 = vmul.bf16 %v775, %v775
      %v792 = vmul.bf16 %v776, %v776
      %v793 = vmul.bf16 %v777, %v777
      %v794 = vmul.bf16 %v778, %v778
      %v795 = vmul.bf16 %v779, %v779
      %v796 = vmul.bf16 %v780, %v780
      %v797 = vmul.bf16 %v781, %v781
      %798 = vmatprep.subr.bf16.mxu0 0
      %799 = vmatpush1.bf16.msra.mxu0 %v782
      %800 = vmatprep.subr.bf16.mxu0 0
      %801 = vmatpush1.bf16.msra.mxu0 %v783
      %802 = vmatprep.subr.bf16.mxu0 0
      %803 = vmatpush1.bf16.msra.mxu0 %v784
      %804 = vmatprep.subr.bf16.mxu0 0
      %805 = vmatpush1.bf16.msra.mxu0 %v785
      %806 = vmatprep.subr.bf16.mxu0 0
      %807 = vmatpush1.bf16.msra.mxu0 %v786
      %808 = vmatprep.subr.bf16.mxu0 0
      %809 = vmatpush1.bf16.msra.mxu0 %v787
      %810 = vmatprep.subr.bf16.mxu0 0
      %811 = vmatpush1.bf16.msra.mxu0 %v788
      %812 = vmatprep.subr.bf16.mxu0 0
      %813 = vmatpush1.bf16.msra.mxu0 %v789
      %814 = vmatprep.subr.bf16.mxu0 0
      %815 = vmatpush1.bf16.msra.mxu0 %v790
      %816 = vmatprep.subr.bf16.mxu0 0
      %817 = vmatpush1.bf16.msra.mxu0 %v791
      %818 = vmatprep.subr.bf16.mxu0 0
      %819 = vmatpush1.bf16.msra.mxu0 %v792
      %820 = vmatprep.subr.bf16.mxu0 0
      %821 = vmatpush1.bf16.msra.mxu0 %v793
      %822 = vmatprep.subr.bf16.mxu0 0
      %823 = vmatpush1.bf16.msra.mxu0 %v794
      %824 = vmatprep.subr.bf16.mxu0 0
      %825 = vmatpush1.bf16.msra.mxu0 %v795
      %826 = vmatprep.subr.bf16.mxu0 0
      %827 = vmatpush1.bf16.msra.mxu0 %v796
      %828 = vmatprep.subr.bf16.mxu0 0
      %829 = vmatpush1.bf16.msra.mxu0 %v797
      %830 = vmatprep.mubr.bf16.mxu0 1065369472
      %831 = vmatmul.mubr.bf16.gmra.mrb[0].mxu0 1065369472
      %v832 = vpop.f32.mrb[0].mxu0
      %v833 = vadd.f32 0.0, %v832
      %v834 = vpop.f32.mrb[0].mxu0
      %v835 = vpop.f32.mrb[0].mxu0
      %v836 = vpop.f32.mrb[0].mxu0
      %837 = vdwg.mxu0
      %v838 = vmul.f32 %v833, 0.00390625
      %v840 = vsel %vm656, %v838, 0
      %842 = vmatprep.subr.mxu0 0.0
      %843 = vmatpush1.msra.mxu0 %v648
      %844 = vmatprep.subr.mxu0 0.0
      %845 = vmatpush1.msra.mxu0 %v649
      %846 = vmatprep.subr.mxu0 0.0
      %847 = vmatpush1.msra.mxu0 %v650
      %848 = vmatprep.subr.mxu0 0.0
      %849 = vmatpush1.msra.mxu0 %v651
      %850 = vmatprep.subr.mxu0 0.0
      %851 = vmatpush1.msra.mxu0 %v652
      %852 = vmatprep.subr.mxu0 0.0
      %853 = vmatpush1.msra.mxu0 %v653
      %854 = vmatprep.subr.mxu0 0.0
      %855 = vmatpush1.msra.mxu0 %v654
      %856 = vmatprep.subr.mxu0 0.0
      %857 = vmatpush1.msra.mxu0 %v655
      %858 = vmatprep.subr.mxu0 0.0
      %859 = vmatpush1.msra.mxu0 0.0
      %860 = vmatprep.subr.mxu0 0.0
      %861 = vmatpush1.msra.mxu0 0.0
      %862 = vmatprep.subr.mxu0 0.0
      %863 = vmatpush1.msra.mxu0 0.0
      %864 = vmatprep.subr.mxu0 0.0
      %865 = vmatpush1.msra.mxu0 0.0
      %866 = vmatprep.subr.mxu0 0.0
      %867 = vmatpush1.msra.mxu0 0.0
      %868 = vmatprep.subr.mxu0 0.0
      %869 = vmatpush1.msra.mxu0 0.0
      %870 = vmatprep.subr.mxu0 0.0
      %871 = vmatpush1.msra.mxu0 0.0
      %872 = vmatprep.subr.mxu0 0.0
      %873 = vmatpush1.msra.mxu0 0.0
      %874 = vmatprep.subr.mxu0 0.0
      %875 = vmatpush1.msra.mxu0 0.0
      %876 = vmatprep.subr.mxu0 0.0
      %877 = vmatpush1.msra.mxu0 0.0
      %878 = vmatprep.subr.mxu0 0.0
      %879 = vmatpush1.msra.mxu0 0.0
      %880 = vmatprep.subr.mxu0 0.0
      %881 = vmatpush1.msra.mxu0 0.0
      %882 = vmatprep.subr.mxu0 0.0
      %883 = vmatpush1.msra.mxu0 0.0
      %884 = vmatprep.subr.mxu0 0.0
      %885 = vmatpush1.msra.mxu0 0.0
      %886 = vmatprep.subr.mxu0 0.0
      %887 = vmatpush1.msra.mxu0 0.0
      %888 = vmatprep.subr.mxu0 0.0
      %889 = vmatpush1.msra.mxu0 0.0
      %890 = vmatprep.subr.mxu0 0.0
      %891 = vmatpush1.msra.mxu0 0.0
      %892 = vmatprep.subr.mxu0 0.0
      %893 = vmatpush1.msra.mxu0 0.0
      %894 = vmatprep.subr.mxu0 0.0
      %895 = vmatpush1.msra.mxu0 0.0
      %896 = vmatprep.subr.mxu0 0.0
      %897 = vmatpush1.msra.mxu0 0.0
      %898 = vmatprep.subr.mxu0 0.0
      %899 = vmatpush1.msra.mxu0 0.0
      %900 = vmatprep.subr.mxu0 0.0
      %901 = vmatpush1.msra.mxu0 0.0
      %902 = vmatprep.subr.mxu0 0.0
      %903 = vmatpush1.msra.mxu0 0.0
      %904 = vmatprep.subr.mxu0 0.0
      %905 = vmatpush1.msra.mxu0 0.0
      %906 = vmatprep.mubr.f32.mxu0 0.0
      %907 = vmatmul.mubr.f32.gmra.mrb[0].mxu0 %v840
      %v908 = vpop.f32.mrb[0].mxu0
      %v909 = vadd.f32 1e-05, %v908
      %v910 = vpop.f32.mrb[0].mxu0
      %911 = vdwg.mxu0
      %v912 = vrsqrt.pop %v909
      %v913 = vlaneseq
      %v914 = vshrl.u32 %v913, 7
      %v915 = vsub.s32 0, %v914
      %v916 = vrot.slane %v912, %v915
      %v917 = vmul.f32 %v734, %v916
      %v918 = vmul.f32 %v735, %v916
      %v919 = vmul.f32 %v736, %v916
      %v920 = vmul.f32 %v737, %v916
      %v921 = vmul.f32 %v738, %v916
      %v922 = vmul.f32 %v739, %v916
      %v923 = vmul.f32 %v740, %v916
      %v924 = vmul.f32 %v741, %v916
      %v925 = vmul.f32 %v742, %v916
      %v926 = vmul.f32 %v743, %v916
      %v927 = vmul.f32 %v744, %v916
      %v928 = vmul.f32 %v745, %v916
      %v929 = vmul.f32 %v746, %v916
      %v930 = vmul.f32 %v747, %v916
      %v931 = vmul.f32 %v748, %v916
      %v932 = vmul.f32 %v749, %v916
      %v933 = vmul.f32 %v750, %v916
      %v934 = vmul.f32 %v751, %v916
      %v935 = vmul.f32 %v752, %v916
      %v936 = vmul.f32 %v753, %v916
      %v937 = vmul.f32 %v754, %v916
      %v938 = vmul.f32 %v755, %v916
      %v939 = vmul.f32 %v756, %v916
      %v940 = vmul.f32 %v757, %v916
      %v941 = vmul.f32 %v758, %v916
      %v942 = vmul.f32 %v759, %v916
      %v943 = vmul.f32 %v760, %v916
      %v944 = vmul.f32 %v761, %v916
      %v945 = vmul.f32 %v762, %v916
      %v946 = vmul.f32 %v763, %v916
      %v947 = vmul.f32 %v764, %v916
      %v948 = vmul.f32 %v765, %v916
      %v949 = vld [vmem:[%s4] sm:$0x1]
      %v951 = vlaneseq
      %v952 = vshrl.u32 %v951, 7
      %v953 = vsub.s32 0, %v952
      %v954 = vrot.slane %v949, %v953
      %v956 = vmul.f32 %v917, %v954
      %v957 = vmul.f32 %v918, %v954
      %v958 = vmul.f32 %v919, %v954
      %v959 = vmul.f32 %v920, %v954
      %v960 = vmul.f32 %v921, %v954
      %v961 = vmul.f32 %v922, %v954
      %v962 = vmul.f32 %v923, %v954
      %v963 = vmul.f32 %v924, %v954
      %v964 = vmul.f32 %v925, %v954
      %v965 = vmul.f32 %v926, %v954
      %v966 = vmul.f32 %v927, %v954
      %v967 = vmul.f32 %v928, %v954
      %v968 = vmul.f32 %v929, %v954
      %v969 = vmul.f32 %v930, %v954
      %v970 = vmul.f32 %v931, %v954
      %v971 = vmul.f32 %v932, %v954
      %v972 = vmul.f32 %v933, %v954
      %v973 = vmul.f32 %v934, %v954
      %v974 = vmul.f32 %v935, %v954
      %v975 = vmul.f32 %v936, %v954
      %v976 = vmul.f32 %v937, %v954
      %v977 = vmul.f32 %v938, %v954
      %v978 = vmul.f32 %v939, %v954
      %v979 = vmul.f32 %v940, %v954
      %v980 = vmul.f32 %v941, %v954
      %v981 = vmul.f32 %v942, %v954
      %v982 = vmul.f32 %v943, %v954
      %v983 = vmul.f32 %v944, %v954
      %v984 = vmul.f32 %v945, %v954
      %v985 = vmul.f32 %v946, %v954
      %v986 = vmul.f32 %v947, %v954
      %v987 = vmul.f32 %v948, %v954
      %v988 = vld [vmem:[%s5] sm:$0x1]
      %v990 = vlaneseq
      %v991 = vshrl.u32 %v990, 7
      %v992 = vsub.s32 0, %v991
      %v993 = vrot.slane %v988, %v992
      %v995 = vadd.f32 %v956, %v993
      %v996 = vadd.f32 %v957, %v993
      %v997 = vadd.f32 %v958, %v993
      %v998 = vadd.f32 %v959, %v993
      %v999 = vadd.f32 %v960, %v993
      %v1000 = vadd.f32 %v961, %v993
      %v1001 = vadd.f32 %v962, %v993
      %v1002 = vadd.f32 %v963, %v993
      %v1003 = vadd.f32 %v964, %v993
      %v1004 = vadd.f32 %v965, %v993
      %v1005 = vadd.f32 %v966, %v993
      %v1006 = vadd.f32 %v967, %v993
      %v1007 = vadd.f32 %v968, %v993
      %v1008 = vadd.f32 %v969, %v993
      %v1009 = vadd.f32 %v970, %v993
      %v1010 = vadd.f32 %v971, %v993
      %v1011 = vadd.f32 %v972, %v993
      %v1012 = vadd.f32 %v973, %v993
      %v1013 = vadd.f32 %v974, %v993
      %v1014 = vadd.f32 %v975, %v993
      %v1015 = vadd.f32 %v976, %v993
      %v1016 = vadd.f32 %v977, %v993
      %v1017 = vadd.f32 %v978, %v993
      %v1018 = vadd.f32 %v979, %v993
      %v1019 = vadd.f32 %v980, %v993
      %v1020 = vadd.f32 %v981, %v993
      %v1021 = vadd.f32 %v982, %v993
      %v1022 = vadd.f32 %v983, %v993
      %v1023 = vadd.f32 %v984, %v993
      %v1024 = vadd.f32 %v985, %v993
      %v1025 = vadd.f32 %v986, %v993
      %v1026 = vadd.f32 %v987, %v993
      %1027 = vst.msk [vmem:[%s251] sm:$0xff] %vm656, %v995
      %1028 = vst.msk [vmem:[%s251 + $0x8] sm:$0xff] %vm656, %v996
      %1029 = vst.msk [vmem:[%s251 + $0x10] sm:$0xff] %vm656, %v997
      %1030 = vst.msk [vmem:[%s251 + $0x18] sm:$0xff] %vm656, %v998
      %1031 = vst.msk [vmem:[%s251 + $0x20] sm:$0xff] %vm656, %v999
      %1032 = vst.msk [vmem:[%s251 + $0x28] sm:$0xff] %vm656, %v1000
      %1033 = vst.msk [vmem:[%s251 + $0x30] sm:$0xff] %vm656, %v1001
      %1034 = vst.msk [vmem:[%s251 + $0x38] sm:$0xff] %vm656, %v1002
      %1035 = vst.msk [vmem:[%s251 + $0x40] sm:$0xff] %vm656, %v1003
      %1036 = vst.msk [vmem:[%s251 + $0x48] sm:$0xff] %vm656, %v1004
      %1037 = vst.msk [vmem:[%s251 + $0x50] sm:$0xff] %vm656, %v1005
      %1038 = vst.msk [vmem:[%s251 + $0x58] sm:$0xff] %vm656, %v1006
      %1039 = vst.msk [vmem:[%s251 + $0x60] sm:$0xff] %vm656, %v1007
      %1040 = vst.msk [vmem:[%s251 + $0x68] sm:$0xff] %vm656, %v1008
      %1041 = vst.msk [vmem:[%s251 + $0x70] sm:$0xff] %vm656, %v1009
      %1042 = vst.msk [vmem:[%s251 + $0x78] sm:$0xff] %vm656, %v1010
      %1043 = vst.msk [vmem:[%s251 + $0x80] sm:$0xff] %vm656, %v1011
      %1044 = vst.msk [vmem:[%s251 + $0x88] sm:$0xff] %vm656, %v1012
      %1045 = vst.msk [vmem:[%s251 + $0x90] sm:$0xff] %vm656, %v1013
      %1046 = vst.msk [vmem:[%s251 + $0x98] sm:$0xff] %vm656, %v1014
      %1047 = vst.msk [vmem:[%s251 + $0xa0] sm:$0xff] %vm656, %v1015
      %1048 = vst.msk [vmem:[%s251 + $0xa8] sm:$0xff] %vm656, %v1016
      %1049 = vst.msk [vmem:[%s251 + $0xb0] sm:$0xff] %vm656, %v1017
      %1050 = vst.msk [vmem:[%s251 + $0xb8] sm:$0xff] %vm656, %v1018
      %1051 = vst.msk [vmem:[%s251 + $0xc0] sm:$0xff] %vm656, %v1019
      %1052 = vst.msk [vmem:[%s251 + $0xc8] sm:$0xff] %vm656, %v1020
      %1053 = vst.msk [vmem:[%s251 + $0xd0] sm:$0xff] %vm656, %v1021
      %1054 = vst.msk [vmem:[%s251 + $0xd8] sm:$0xff] %vm656, %v1022
      %1055 = vst.msk [vmem:[%s251 + $0xe0] sm:$0xff] %vm656, %v1023
      %1056 = vst.msk [vmem:[%s251 + $0xe8] sm:$0xff] %vm656, %v1024
      %1057 = vst.msk [vmem:[%s251 + $0xf0] sm:$0xff] %vm656, %v1025
      %1058 = vst.msk [vmem:[%s251 + $0xf8] sm:$0xff] %vm656, %v1026
      %p1059 = scmp.lt.s32.totalorder %s17, 1
      %s1060 = scalar_select %p1059, %s17, 1
      %s1061 = smul.addr %s1060, 32
      %s1062 = smul.addr %s1061, 8
      %s1063 = scalar_lea.vmem %s6, %s1062
      // Predicated region
      $region45: #{tpu_custom_call.1} parent=43 // pred_check
        %p1064 = pneg %p166
      $region46: #{tpu_custom_call.1} parent=43 // pred_check_branch
        %1066 = sbr.rel (%p1064) target = $region48
      $region47: #{tpu_custom_call.1} parent=43 // pred_region
        _
      $region48: #{tpu_custom_call.1} parent=43 // pred_fallthru
        _
    $region44: #{tpu_custom_call.1} parent=5 // pred_fallthru
      _
    %p1067 = scmp.le.s32.totalorder 2, %s12
    // Predicated region
    $region49: #{tpu_custom_call.1} parent=5 // pred_check
      %p1068 = pneg %p1067
    $region50: #{tpu_custom_call.1} parent=5 // pred_check_branch
      %1070 = sbr.rel (%p1068) target = $region52
    $region51: #{tpu_custom_call.1} parent=5 // pred_region
      %s1071 = ssub.s32 %s12, 2
      // Predicated region
      $region53: #{tpu_custom_call.1} parent=51 // pred_check
        %p1072 = pneg %p172
      $region54: #{tpu_custom_call.1} parent=51 // pred_check_branch
        %1074 = sbr.rel (%p1072) target = $region56
      $region55: #{tpu_custom_call.1} parent=51 // pred_region
        %p1075 = scmp.lt.s32.totalorder %s18, 1
        %s1076 = scalar_select %p1075, %s18, 1
        %s1077 = smul.addr %s1076, 32
        %s1078 = smul.addr %s1077, 8
        %s1079 = scalar_lea.vmem %s6, %s1078
      $region56: #{tpu_custom_call.1} parent=51 // pred_fallthru
        _
    $region52: #{tpu_custom_call.1} parent=5 // pred_fallthru
      _
  $region6: #{tpu_custom_call.1} parent=0 // loop_footer
    %s16 = sadd.s32 1, %s12
  $region7: #{tpu_custom_call.1} parent=0 // loop_footer_branch
    %11 = sbr.rel target = $region3
  $region8: #{tpu_custom_call.1} parent=0 // loop_exit
    _

</llo_original>
